<compile_context>
chip_gen: v5e
topology: v5e:2x2
jax: 0.10.0
libtpu: 0.0.40
codegen_flags: <defaults>
</compile_context>

<pallas_src>
import functools

import jax
import jax.numpy as jnp
from jax.experimental import pallas as pl
from jax.experimental.pallas import tpu as pltpu

ALPHA = 0.25
GAMMA = 2.0

LANES = 128
SUBLANES = 8
MAX_BLOCK_ROWS = 8192          # 8192 x 128 f32 = 4 MiB / input / buffer
PAD_LOGIT = -1.0e4             # sigmoid(-1e4) == 0, focal loss exactly 0
VMEM_LIMIT_BYTES = 32 * 1024 * 1024


def _ceil_div(a, b):
    return -(-a // b)


def _num_tensorcores():
    """2 for megacore / multi-TC chips (v7x, v4, v5p); 1 for v5e/v6e."""
    try:
        kind = jax.devices()[0].device_kind.lower()
    except Exception:
        return 1
    if "v7" in kind or "v4" in kind or "v5p" in kind:
        return 2
    return 1


def _focal_loss_kernel(pred_ref, true_ref, loss_out_ref, pos_out_ref,
                       *, alpha, gamma, block_rows):
    i = pl.program_id(1)   # reduction axis ("arbitrary")

    @pl.when(i == 0)
    def _init():
        loss_out_ref[...] = jnp.zeros_like(loss_out_ref)
        pos_out_ref[...] = jnp.zeros_like(pos_out_ref)

    # Keep all math in f32 (v5e VPU/EUP have no bf16); inputs may be bf16.
    x = pred_ref[...].astype(jnp.float32)   # logits (padding == PAD_LOGIT)
    y = true_ref[...].astype(jnp.float32)   # targets in [0, 1] (padding == 0)

    # Numerically-stable sigmoid focal loss; 2 transcendentals per element
    # (exp + log1p), reciprocal goes to the EUP slot.
    e = jnp.exp(-jnp.abs(x))
    ce = jnp.maximum(x, 0.0) - x * y + jnp.log1p(e)
    inv = pl.reciprocal(1.0 + e, approx=True)
    p = jnp.where(x >= 0.0, inv, e * inv)            # sigmoid(x)

    # u = 1 - p_t = 1 - (p*y + (1-p)*(1-y)) = p + y - 2*p*y
    u = p + y - 2.0 * p * y
    if float(gamma) == 2.0:
        modulator = u * u                            # avoid pow -> exp/log
    else:
        modulator = jnp.power(jnp.maximum(u, 0.0), gamma)
    loss = ce * modulator
    if alpha >= 0:
        # alpha_t = alpha*y + (1-alpha)*(1-y) = (1-alpha) + (2*alpha-1)*y
        c0 = float(1.0 - alpha)
        c1 = float(2.0 * alpha - 1.0)
        loss = (c0 + c1 * y) * loss

    pos = (y > 0.5).astype(jnp.float32)              # padding has y == 0

    # Reduce the block only down to one vreg shape (8,128): pure VPU adds,
    # layout-preserving reshape (trailing (8,128) tiles untouched).
    loss_part = loss.reshape(block_rows // SUBLANES, SUBLANES, LANES).sum(axis=0)
    pos_part = pos.reshape(block_rows // SUBLANES, SUBLANES, LANES).sum(axis=0)
    loss_out_ref[0, :, :] = loss_out_ref[0, :, :] + loss_part
    pos_out_ref[0, :, :] = pos_out_ref[0, :, :] + pos_part


def electron_salience_loss(pred_values_list, true_values_list,
                           alpha=ALPHA, gamma=GAMMA,
                           max_block_rows=MAX_BLOCK_ROWS):
    """pred/true value lists: per-level 1-D arrays at the unioned sparse indices."""
    # TODO(synk): the sparse COO index-union (union_sparse_indices /
    # minkowski_to_torch_sparse) has no clean Pallas equivalent; it is assumed
    # to have been done in host/JAX glue, producing aligned value vectors.
    assert len(pred_values_list) == len(true_values_list)
    for p, t in zip(pred_values_list, true_values_list):
        assert p.shape == t.shape

    n = int(sum(int(p.size) for p in pred_values_list))

    # Tiling: pick block count first (multiple of n_core), derive block_rows
    # from it -> never creates a full all-padding dummy block.
    rows_needed = max(_ceil_div(n, LANES), 1)
    n_blocks = max(_ceil_div(rows_needed, max_block_rows), 1)
    n_core = _num_tensorcores() if n_blocks >= 2 else 1
    n_blocks = _ceil_div(n_blocks, n_core) * n_core
    block_rows = _ceil_div(_ceil_div(rows_needed, n_blocks), SUBLANES) * SUBLANES
    n_inner = n_blocks // n_core
    rows_padded = n_blocks * block_rows
    pad = rows_padded * LANES - n

    # Single materialization: padding constants are concatenated along with
    # the level vectors (no separate jnp.pad copy afterwards).
    # TODO(synk): fully zero-copy per-level feeding (scalar-prefetched level
    # offsets in the index_map) is possible but not implemented here.
    pdt = pred_values_list[0].dtype
    tdt = true_values_list[0].dtype
    pred_p = jnp.concatenate(
        [p.reshape(-1) for p in pred_values_list]
        + [jnp.full((pad,), PAD_LOGIT, dtype=pdt)]).reshape(rows_padded, LANES)
    true_p = jnp.concatenate(
        [t.reshape(-1) for t in true_values_list]
        + [jnp.zeros((pad,), dtype=tdt)]).reshape(rows_padded, LANES)

    kernel = functools.partial(
        _focal_loss_kernel, alpha=alpha, gamma=gamma, block_rows=block_rows)

    in_spec = pl.BlockSpec((block_rows, LANES),
                           lambda c, i: (c * n_inner + i, 0))
    out_spec = pl.BlockSpec((1, SUBLANES, LANES), lambda c, i: (c, 0, 0))

    loss_parts, pos_parts = pl.pallas_call(
        kernel,
        out_shape=(
            jax.ShapeDtypeStruct((n_core, SUBLANES, LANES), jnp.float32),
            jax.ShapeDtypeStruct((n_core, SUBLANES, LANES), jnp.float32),
        ),
        grid_spec=pltpu.PrefetchScalarGridSpec(
            num_scalar_prefetch=0,
            grid=(n_core, n_inner),
            in_specs=[in_spec, in_spec],
            out_specs=(out_spec, out_spec),
        ),
        compiler_params=pltpu.CompilerParams(
            dimension_semantics=("parallel", "arbitrary"),
            vmem_limit_bytes=VMEM_LIMIT_BYTES),
    )(pred_p, true_p)

    total_loss = jnp.sum(loss_parts)
    num_pos = jnp.maximum(jnp.sum(pos_parts), 1.0)   # clamp_min(1)
    return total_loss / num_pos


def _reference_loss(pred_list, true_list, alpha=ALPHA, gamma=GAMMA):
    """Pure-JAX reference (mirrors torchvision.ops.sigmoid_focal_loss + module)."""
    x = jnp.concatenate([p.reshape(-1) for p in pred_list]).astype(jnp.float32)
    y = jnp.concatenate([t.reshape(-1) for t in true_list]).astype(jnp.float32)
    ce = jnp.maximum(x, 0.0) - x * y + jnp.log1p(jnp.exp(-jnp.abs(x)))
    p = jax.nn.sigmoid(x)
    p_t = p * y + (1.0 - p) * (1.0 - y)
    loss = ce * jnp.power(1.0 - p_t, gamma)
    if alpha >= 0:
        alpha_t = alpha * y + (1.0 - alpha) * (1.0 - y)
        loss = alpha_t * loss
    num_pos = jnp.maximum(jnp.sum(y > 0.5), 1)
    return jnp.sum(loss) / num_pos


def _make_levels(key, level_sizes):
    pred_values_list, true_values_list = [], []
    for sz in level_sizes:
        kp, kt, key = jax.random.split(key, 3)
        # Predicted foreground-mask logits.
        pred_values_list.append(jax.random.normal(kp, (sz,), jnp.float32) * 2.0)
        # Peak-normalized image values in [0, 1]; some exceed 0.5 (positives).
        true_values_list.append(jax.random.uniform(kt, (sz,), jnp.float32))
    return pred_values_list, true_values_list, key


if __name__ == "__main__":
    key = jax.random.PRNGKey(0)

    # Small case (tiny-n path: one small block, grid (1,1)).
    pred_s, true_s, key = _make_levels(key, [200, 150, 100])
    loss_s = jax.block_until_ready(electron_salience_loss(pred_s, true_s))
    ref_s = _reference_loss(pred_s, true_s)
    # Tolerances account for the approx (EUP) reciprocal in the sigmoid.
    assert jnp.allclose(loss_s, ref_s, rtol=5e-3, atol=1e-5), (loss_s, ref_s)

    # Larger case (single large block on this size; multi-block for bigger n).
    pred_l, true_l, key = _make_levels(key, [300000, 200000, 100000])
    loss_l = jax.block_until_ready(electron_salience_loss(pred_l, true_l))
    ref_l = _reference_loss(pred_l, true_l)
    assert jnp.allclose(loss_l, ref_l, rtol=5e-3, atol=1e-5), (loss_l, ref_l)

    print("KERNEL_OK")
</pallas_src>

<mosaic_0001>
module attributes {stable_mosaic.version = 11 : i64} {
  func.func @_focal_loss_kernel(%arg0: i32, %arg1: i32, %arg2: memref<8x128xf32, #tpu.memory_space<vmem>>, %arg3: memref<8x128xf32, #tpu.memory_space<vmem>>, %arg4: memref<1x8x128xf32, #tpu.memory_space<vmem>>, %arg5: memref<1x8x128xf32, #tpu.memory_space<vmem>>) attributes {dimension_semantics = [#tpu.dimension_semantics<parallel>, #tpu.dimension_semantics<arbitrary>], iteration_bounds = array<i64: 1, 1>, scalar_prefetch = 0 : i64, scratch_operands = 0 : i64, tpu.core_type = #tpu.core_type<tc>, window_params = [{transform_indices = @transform_0, window_bounds = array<i64: 8, 128>}, {transform_indices = @transform_1, window_bounds = array<i64: 8, 128>}, {transform_indices = @transform_2, window_bounds = array<i64: 1, 8, 128>}, {transform_indices = @transform_3, window_bounds = array<i64: 1, 8, 128>}]} {
    %c0_i32 = arith.constant 0 : i32
    %0 = arith.cmpi eq, %arg1, %c0_i32 : i32
    %1 = arith.extui %0 : i1 to i32
    %c0_i32_0 = arith.constant 0 : i32
    %2 = arith.cmpi ne, %1, %c0_i32_0 : i32
    scf.if %2 {
      %cst_25 = arith.constant 0.000000e+00 : f32
      %54 = vector.broadcast %cst_25 : f32 to vector<1x8x128xf32>
      %c0_26 = arith.constant 0 : index
      %c0_27 = arith.constant 0 : index
      %c0_28 = arith.constant 0 : index
      %55 = vector.load %arg4[%c0_26, %c0_27, %c0_28] : memref<1x8x128xf32, #tpu.memory_space<vmem>>, vector<1x8x128xf32>
      tpu.vector_store %arg4[%c0_26, %c0_27, %c0_28], %54 {strides = array<i32>} : memref<1x8x128xf32, #tpu.memory_space<vmem>>, vector<1x8x128xf32>,
      %cst_29 = arith.constant 0.000000e+00 : f32
      %56 = vector.broadcast %cst_29 : f32 to vector<1x8x128xf32>
      %c0_30 = arith.constant 0 : index
      %c0_31 = arith.constant 0 : index
      %c0_32 = arith.constant 0 : index
      %57 = vector.load %arg5[%c0_30, %c0_31, %c0_32] : memref<1x8x128xf32, #tpu.memory_space<vmem>>, vector<1x8x128xf32>
      tpu.vector_store %arg5[%c0_30, %c0_31, %c0_32], %56 {strides = array<i32>} : memref<1x8x128xf32, #tpu.memory_space<vmem>>, vector<1x8x128xf32>,
    } else {
    }
    %c0 = arith.constant 0 : index
    %c0_1 = arith.constant 0 : index
    %3 = vector.load %arg2[%c0, %c0_1] : memref<8x128xf32, #tpu.memory_space<vmem>>, vector<8x128xf32>
    %c0_2 = arith.constant 0 : index
    %c0_3 = arith.constant 0 : index
    %4 = vector.load %arg3[%c0_2, %c0_3] : memref<8x128xf32, #tpu.memory_space<vmem>>, vector<8x128xf32>
    %5 = math.absf %3 : vector<8x128xf32>
    %cst = arith.constant 0.000000e+00 : f32
    %6 = vector.broadcast %cst : f32 to vector<8x128xf32>
    %7 = arith.subf %6, %5 : vector<8x128xf32>
    %8 = math.exp %7 : vector<8x128xf32>
    %cst_4 = arith.constant 0.000000e+00 : f32
    %9 = vector.broadcast %cst_4 : f32 to vector<8x128xf32>
    %10 = arith.maximumf %3, %9 : vector<8x128xf32>
    %11 = arith.mulf %3, %4 : vector<8x128xf32>
    %12 = arith.subf %10, %11 : vector<8x128xf32>
    %13 = math.log1p %8 : vector<8x128xf32>
    %14 = arith.addf %12, %13 : vector<8x128xf32>
    %cst_5 = arith.constant 1.000000e+00 : f32
    %15 = vector.broadcast %cst_5 : f32 to vector<8x128xf32>
    %16 = arith.addf %15, %8 : vector<8x128xf32>
    %17 = tpu.reciprocal %16 {approx = true} : vector<8x128xf32> -> vector<8x128xf32>
    %cst_6 = arith.constant 0.000000e+00 : f32
    %18 = vector.broadcast %cst_6 : f32 to vector<8x128xf32>
    %19 = arith.cmpf oge, %3, %18 : vector<8x128xf32>
    %20 = arith.mulf %8, %17 : vector<8x128xf32>
    %21 = arith.select %19, %17, %20 : vector<8x128xi1>, vector<8x128xf32>
    %22 = arith.addf %21, %4 : vector<8x128xf32>
    %cst_7 = arith.constant 2.000000e+00 : f32
    %23 = vector.broadcast %cst_7 : f32 to vector<8x128xf32>
    %24 = arith.mulf %23, %21 : vector<8x128xf32>
    %25 = arith.mulf %24, %4 : vector<8x128xf32>
    %26 = arith.subf %22, %25 : vector<8x128xf32>
    %27 = arith.mulf %26, %26 : vector<8x128xf32>
    %28 = arith.mulf %14, %27 : vector<8x128xf32>
    %cst_8 = arith.constant -5.000000e-01 : f32
    %29 = vector.broadcast %cst_8 : f32 to vector<8x128xf32>
    %30 = arith.mulf %29, %4 : vector<8x128xf32>
    %cst_9 = arith.constant 7.500000e-01 : f32
    %31 = vector.broadcast %cst_9 : f32 to vector<8x128xf32>
    %32 = arith.addf %31, %30 : vector<8x128xf32>
    %33 = arith.mulf %32, %28 : vector<8x128xf32>
    %cst_10 = arith.constant 5.000000e-01 : f32
    %34 = vector.broadcast %cst_10 : f32 to vector<8x128xf32>
    %35 = arith.cmpf ogt, %4, %34 : vector<8x128xf32>
    %36 = arith.extui %35 : vector<8x128xi1> to vector<8x128xi32>
    %37 = arith.sitofp %36 : vector<8x128xi32> to vector<8x128xf32>
    %38 = vector.shape_cast %33 : vector<8x128xf32> to vector<1x8x128xf32>
    %cst_11 = arith.constant dense<0.000000e+00> : vector<8x128xf32>
    %39 = vector.multi_reduction <add>, %38, %cst_11 [0] : vector<1x8x128xf32> to vector<8x128xf32>
    %40 = vector.shape_cast %37 : vector<8x128xf32> to vector<1x8x128xf32>
    %cst_12 = arith.constant dense<0.000000e+00> : vector<8x128xf32>
    %41 = vector.multi_reduction <add>, %40, %cst_12 [0] : vector<1x8x128xf32> to vector<8x128xf32>
    %c0_13 = arith.constant 0 : index
    %c0_14 = arith.constant 0 : index
    %c0_15 = arith.constant 0 : index
    %42 = vector.load %arg4[%c0_13, %c0_14, %c0_15] : memref<1x8x128xf32, #tpu.memory_space<vmem>>, vector<1x8x128xf32>
    %43 = vector.shape_cast %42 : vector<1x8x128xf32> to vector<8x128xf32>
    %44 = arith.addf %43, %39 : vector<8x128xf32>
    %c0_16 = arith.constant 0 : index
    %c0_17 = arith.constant 0 : index
    %c0_18 = arith.constant 0 : index
    %45 = vector.load %arg4[%c0_16, %c0_17, %c0_18] : memref<1x8x128xf32, #tpu.memory_space<vmem>>, vector<1x8x128xf32>
    %46 = vector.shape_cast %45 : vector<1x8x128xf32> to vector<8x128xf32>
    %47 = vector.shape_cast %44 : vector<8x128xf32> to vector<1x8x128xf32>
    tpu.vector_store %arg4[%c0_16, %c0_17, %c0_18], %47 {strides = array<i32>} : memref<1x8x128xf32, #tpu.memory_space<vmem>>, vector<1x8x128xf32>,
    %c0_19 = arith.constant 0 : index
    %c0_20 = arith.constant 0 : index
    %c0_21 = arith.constant 0 : index
    %48 = vector.load %arg5[%c0_19, %c0_20, %c0_21] : memref<1x8x128xf32, #tpu.memory_space<vmem>>, vector<1x8x128xf32>
    %49 = vector.shape_cast %48 : vector<1x8x128xf32> to vector<8x128xf32>
    %50 = arith.addf %49, %41 : vector<8x128xf32>
    %c0_22 = arith.constant 0 : index
    %c0_23 = arith.constant 0 : index
    %c0_24 = arith.constant 0 : index
    %51 = vector.load %arg5[%c0_22, %c0_23, %c0_24] : memref<1x8x128xf32, #tpu.memory_space<vmem>>, vector<1x8x128xf32>
    %52 = vector.shape_cast %51 : vector<1x8x128xf32> to vector<8x128xf32>
    %53 = vector.shape_cast %50 : vector<8x128xf32> to vector<1x8x128xf32>
    tpu.vector_store %arg5[%c0_22, %c0_23, %c0_24], %53 {strides = array<i32>} : memref<1x8x128xf32, #tpu.memory_space<vmem>>, vector<1x8x128xf32>,
    return
  }
  func.func @transform_0(%arg0: i32, %arg1: i32) -> (i32, i32) {
    %c1_i32 = arith.constant 1 : i32
    %0 = arith.muli %arg0, %c1_i32 : i32
    %1 = arith.addi %0, %arg1 : i32
    %c0_i32 = arith.constant 0 : i32
    %c0_i32_0 = arith.constant 0 : i32
    return %1, %c0_i32 : i32, i32
  }
  func.func @transform_1(%arg0: i32, %arg1: i32) -> (i32, i32) {
    %c1_i32 = arith.constant 1 : i32
    %0 = arith.muli %arg0, %c1_i32 : i32
    %1 = arith.addi %0, %arg1 : i32
    %c0_i32 = arith.constant 0 : i32
    %c0_i32_0 = arith.constant 0 : i32
    return %1, %c0_i32 : i32, i32
  }
  func.func @transform_2(%arg0: i32, %arg1: i32) -> (i32, i32, i32) {
    %c0_i32 = arith.constant 0 : i32
    %c0_i32_0 = arith.constant 0 : i32
    %c0_i32_1 = arith.constant 0 : i32
    return %arg0, %c0_i32, %c0_i32_0 : i32, i32, i32
  }
  func.func @transform_3(%arg0: i32, %arg1: i32) -> (i32, i32, i32) {
    %c0_i32 = arith.constant 0 : i32
    %c0_i32_0 = arith.constant 0 : i32
    %c0_i32_1 = arith.constant 0 : i32
    return %arg0, %c0_i32, %c0_i32_0 : i32, i32, i32
  }
}

</mosaic_0001>

<llo_original>
// kernel: tpu_custom_call.1
$region0: #{tpu_custom_call.1}
  #allocation0 [shape = 'u32[]', space=smem, size = 0x4, offset = 0x4, fixed_abs, tag = 'smem constant byte address 0x4 - core index']
  #allocation1 [shape = 'u32[72,128]{1,0:T(1,128)}', space=vmem, size = 0x9000, scoped, tag = 'internal scratch']
  %s0 = inlined_call_operand.hbm [shape: f32[8,128], index: 0, kind: input, shape index: {}]
  %s1 = inlined_call_operand.hbm [shape: f32[8,128], index: 1, kind: input, shape index: {}]
  %s2 = inlined_call_operand.hbm [shape: f32[1,8,128], index: 2, kind: output, shape index: {0}]
  %s3 = inlined_call_operand.hbm [shape: f32[1,8,128], index: 3, kind: output, shape index: {1}]
  %4 = xla_tuple %s2, %s3
  %s5 = sld [smem:[#allocation0]]
  $region38: #{tpu_custom_call.1} parent=0
    _
  %s7 = ssub.s32 1, %s5
  %s8 = scalar_select 0, %s7, %s5
  $region1: #{tpu_custom_call.1} parent=0
    #allocation2 [shape = 'u8[4096]{0}', space=vmem, size = 0x1000, scoped, tag = 'input window, operand 0, single buffered']
    #allocation3 [shape = 's32[1]{0}', space=sflag, size = 0x4, scoped, tag = 'scoped memory for tpu_custom_call.1']
    #allocation4 [shape = 's32[1]{0}', space=sflag, size = 0x4, scoped, tag = 'scoped memory for tpu_custom_call.1']
    #allocation5 [shape = 'u8[4096]{0}', space=vmem, size = 0x1000, scoped, tag = 'input window, operand 1, single buffered']
    #allocation6 [shape = 's32[1]{0}', space=sflag, size = 0x4, scoped, tag = 'scoped memory for tpu_custom_call.1']
    #allocation7 [shape = 'u8[4096]{0}', space=vmem, size = 0x1000, scoped, tag = 'output window, operand 0, single buffered']
    #allocation8 [shape = 'u8[4096]{0}', space=vmem, size = 0x1000, scoped, tag = 'output window, operand 1, single buffered']
    #allocation9 [shape = 's32[1]{0}', space=sflag, size = 0x4, scoped, tag = 'scoped memory for tpu_custom_call.1']
    %9 = vsyncpa [#allocation3], 0
    %10 = vsyncpa [#allocation6], 0
    %11 = vsyncpa [#allocation4], 0
    %12 = vsyncpa [#allocation9], 0
    // Predicated region
    $region2: #{tpu_custom_call.1} parent=1 // pred_check
      _
    $region3: #{tpu_custom_call.1} parent=1 // pred_check_branch
      %14 = sbr.rel (0) target = $region5
    $region4: #{tpu_custom_call.1} parent=1 // pred_region
      %s15 = sadd.s32 0, 0
      %17 = vsyncadd [#allocation3], 0
      %s18 = smul.addr %s15, 8
      %s19 = scalar_lea.hbm %s0, %s18
      %s21 = sshll.u32 %s19, 4
      %s22 = int_to_ptr.hbm [resolvable:$true] %s21
      %s23 = sshll.u32 [#allocation2], 4
      %s24 = int_to_ptr.vmem [resolvable:$true] %s23
      %26 = dma.hbm_to_vmem [thread:$0]  %s22, 128, %s24, [#allocation3]
    $region5: #{tpu_custom_call.1} parent=1 // pred_fallthru
      _
    // Predicated region
    $region6: #{tpu_custom_call.1} parent=1 // pred_check
      _
    $region7: #{tpu_custom_call.1} parent=1 // pred_check_branch
      %28 = sbr.rel (0) target = $region9
    $region8: #{tpu_custom_call.1} parent=1 // pred_region
      %s29 = sadd.s32 0, 0
      %31 = vsyncadd [#allocation6], 0
      %s32 = smul.addr %s29, 8
      %s33 = scalar_lea.hbm %s1, %s32
      %s35 = sshll.u32 %s33, 4
      %s36 = int_to_ptr.hbm [resolvable:$true] %s35
      %s37 = sshll.u32 [#allocation5], 4
      %s38 = int_to_ptr.vmem [resolvable:$true] %s37
      %40 = dma.hbm_to_vmem [thread:$0]  %s36, 128, %s38, [#allocation6]
    $region9: #{tpu_custom_call.1} parent=1 // pred_fallthru
      _
    // Predicated region
    $region10: #{tpu_custom_call.1} parent=1 // pred_check
      _
    $region11: #{tpu_custom_call.1} parent=1 // pred_check_branch
      %42 = sbr.rel (0) target = $region13
    $region12: #{tpu_custom_call.1} parent=1 // pred_region
      %44 = dma.done [#allocation3], 128
    $region13: #{tpu_custom_call.1} parent=1 // pred_fallthru
      _
    // Predicated region
    $region14: #{tpu_custom_call.1} parent=1 // pred_check
      _
    $region15: #{tpu_custom_call.1} parent=1 // pred_check_branch
      %46 = sbr.rel (0) target = $region17
    $region16: #{tpu_custom_call.1} parent=1 // pred_region
      %48 = dma.done [#allocation6], 128
    $region17: #{tpu_custom_call.1} parent=1 // pred_fallthru
      _
    %s49 = sadd.s32 0, 0
    %s50 = sadd.s32 0, 0
    %p51 = scmp.eq.s32.totalorder 0, 0
    // Predicated region
    $region18: #{tpu_custom_call.1} parent=1 // pred_check
      %p52 = pneg %p51
    $region19: #{tpu_custom_call.1} parent=1 // pred_check_branch
      %54 = sbr.rel (%p52) target = $region21
    $region20: #{tpu_custom_call.1} parent=1 // pred_region
      %55 = vst [vmem:[#allocation7] sm:$0xff] 0.0
      %56 = vst [vmem:[#allocation8] sm:$0xff] 0.0
    $region21: #{tpu_custom_call.1} parent=1 // pred_fallthru
      _
    %v57 = vld [vmem:[#allocation2] sm:$0xff]
    %v58 = vld [vmem:[#allocation5] sm:$0xff]
    %v59 = vand.u32 2147483647, %v57
    %v60 = vsub.f32 0.0, %v59
    %v61 = vmul.f32 %v60, 1.442695
    %v62 = vpow.pop %v61
    %v63 = vmax.f32 %v57, 0.0
    %v64 = vmul.f32 %v57, %v58
    %v65 = vsub.f32 %v63, %v64
    %v66 = vadd.f32 %v62, 1.0
    %v67 = vlog2.pop %v66
    %v68 = vmul.f32 %v67, 0.6931472
    %v69 = vmul.f32 -0.5, %v62
    %v70 = vadd.f32 %v69, 1.0
    %v71 = vmul.f32 %v70, %v62
    %v72 = vand.u32 2147483647, %v62
    %vm73 = vcmp.lt.f32.partialorder %v72, 0.0004427343
    %v74 = vsel %vm73, %v71, %v68
    %v75 = vadd.f32 %v65, %v74
    %v76 = vadd.f32 %v62, 1.0
    %v77 = vrcp.pop %v76
    %vm78 = vcmp.ge.f32.partialorder %v57, 0.0
    %v79 = vmul.f32 %v62, %v77
    %v80 = vsel %vm78, %v77, %v79
    %v81 = vadd.f32 %v80, %v58
    %v82 = vmul.f32 %v80, 2.0
    %v83 = vmul.f32 %v82, %v58
    %v84 = vsub.f32 %v81, %v83
    %v85 = vmul.f32 %v84, %v84
    %v86 = vmul.f32 %v75, %v85
    %v87 = vmul.f32 %v58, -0.5
    %v88 = vadd.f32 %v87, 0.75
    %v89 = vmul.f32 %v88, %v86
    %vm90 = vcmp.gt.f32.partialorder %v58, 0.5
    %v91 = vsel %vm90, 1, 0
    %v92 = vcvt.s32.f32 %v91
    %v93 = vadd.f32 %v89, 0.0
    %v94 = vadd.f32 %v92, 0.0
    %v95 = vld [vmem:[#allocation7] sm:$0xff]
    %v96 = vadd.f32 %v95, %v93
    %97 = vst [vmem:[#allocation7] sm:$0xff] %v96
    %v98 = vld [vmem:[#allocation8] sm:$0xff]
    %v99 = vadd.f32 %v98, %v94
    %100 = vst [vmem:[#allocation8] sm:$0xff] %v99
    // Predicated region
    $region22: #{tpu_custom_call.1} parent=1 // pred_check
      _
    $region23: #{tpu_custom_call.1} parent=1 // pred_check_branch
      %102 = sbr.rel (0) target = $region25
    $region24: #{tpu_custom_call.1} parent=1 // pred_region
      %104 = vsyncadd [#allocation4], 0
      %s106 = sshll.u32 [#allocation7], 4
      %s107 = int_to_ptr.vmem [resolvable:$true] %s106
      %s108 = sshll.u32 %s2, 4
      %s109 = int_to_ptr.hbm [resolvable:$true] %s108
      %111 = dma.vmem_to_hbm [thread:$0]  %s107, 128, %s109, [#allocation4]
    $region25: #{tpu_custom_call.1} parent=1 // pred_fallthru
      _
    // Predicated region
    $region26: #{tpu_custom_call.1} parent=1 // pred_check
      _
    $region27: #{tpu_custom_call.1} parent=1 // pred_check_branch
      %113 = sbr.rel (0) target = $region29
    $region28: #{tpu_custom_call.1} parent=1 // pred_region
      %115 = vsyncadd [#allocation9], 0
      %s117 = sshll.u32 [#allocation8], 4
      %s118 = int_to_ptr.vmem [resolvable:$true] %s117
      %s119 = sshll.u32 %s3, 4
      %s120 = int_to_ptr.hbm [resolvable:$true] %s119
      %122 = dma.vmem_to_hbm [thread:$0]  %s118, 128, %s120, [#allocation9]
    $region29: #{tpu_custom_call.1} parent=1 // pred_fallthru
      _
    // Predicated region
    $region30: #{tpu_custom_call.1} parent=1 // pred_check
      _
    $region31: #{tpu_custom_call.1} parent=1 // pred_check_branch
      %124 = sbr.rel (0) target = $region33
    $region32: #{tpu_custom_call.1} parent=1 // pred_region
      %126 = dma.done [#allocation4], 128
    $region33: #{tpu_custom_call.1} parent=1 // pred_fallthru
      _
    // Predicated region
    $region34: #{tpu_custom_call.1} parent=1 // pred_check
      _
    $region35: #{tpu_custom_call.1} parent=1 // pred_check_branch
      %128 = sbr.rel (0) target = $region37
    $region36: #{tpu_custom_call.1} parent=1 // pred_region
      %130 = dma.done [#allocation9], 128
    $region37: #{tpu_custom_call.1} parent=1 // pred_fallthru
      _
    %131 = vsyncpa [#allocation3], 1
    %132 = vsyncpa [#allocation6], 1
    %133 = vsyncpa [#allocation4], 1
    %134 = vsyncpa [#allocation9], 1

</llo_original>
